<compile_context>
chip_gen: v7x
topology: tpu7x:2x2x1
jax: 0.10.0
libtpu: 0.0.40
codegen_flags: <defaults>
</compile_context>

<pallas_src>
import functools

import jax
import jax.numpy as jnp
from jax import lax
from jax.experimental import pallas as pl
from jax.experimental.pallas import tpu as pltpu


def _lora_linear_kernel(x_ref, w_ref, low_ref, lt_ref, b_ref, out_ref, acc_ref):
    """Fused frozen-linear + LoRA-up, tiled over (M, N, K).

    x_ref  : [tm, tk]  activations tile            (compute dtype)
    w_ref  : [tn, tk]  frozen weight tile [N, K]   (compute dtype, NOT transposed)
    low_ref: [tm, r ]  precomputed scale*(x @ R^T) (compute dtype)
    lt_ref : [tn, r ]  lora_left_weight tile
    b_ref  : [1,  tn]  bias tile
    out_ref: [tm, tn]
    acc_ref: [tm, tn]  f32 base-matmul accumulator (resident across K)
    """
    k = pl.program_id(2)

    @pl.when(k == 0)
    def _():
        acc_ref[...] = jnp.zeros_like(acc_ref)

    # acc[m, n] += sum_k x[m, k] * W[n, k]  (contract last dims; no transpose)
    acc_ref[...] += lax.dot_general(
        x_ref[...], w_ref[...], (((1,), (1,)), ((), ())),
        preferred_element_type=jnp.float32)

    @pl.when(k == pl.num_programs(2) - 1)
    def _():
        # residual[m, n] = sum_r low[m, r] * L[n, r]   (tiny: r-deep contraction)
        residual = lax.dot_general(
            low_ref[...], lt_ref[...], (((1,), (1,)), ((), ())),
            preferred_element_type=jnp.float32)
        out = acc_ref[...] + b_ref[...].astype(jnp.float32) + residual
        out_ref[...] = out.astype(out_ref.dtype)


def _round_up(v, m):
    return (v + m - 1) // m * m


def column_parallel_linear_lora(x, weight, lora_right, lora_left, bias=None,
                                lora_scaling=1.0, lora_dim=4,
                                compute_dtype=jnp.bfloat16,
                                tm=512, tn=1024, tk=2048,
                                vmem_limit_bytes=None):
    """JAX/Pallas equivalent of ColumnParallelLinear_LoRA.forward (world_size=1)."""
    S, B, K = x.shape
    N, Kw = weight.shape
    assert Kw == K
    r, Kr = lora_right.shape
    assert Kr == K and lora_left.shape == (N, r) and r == lora_dim
    if bias is None:
        bias = jnp.zeros((N,), dtype=x.dtype)

    out_dtype = x.dtype
    M = S * B
    scale = float(lora_scaling) / float(lora_dim)

    # Adaptive tile sizes: lane-dense N tiles (128-mult), sublane-aligned M tiles.
    # Defaults chosen so typical LLM dims (128/256 multiples) hit the no-pad path.
    tm = min(tm, _round_up(M, 8))
    tn = min(tn, _round_up(N, 128))
    tk = min(tk, _round_up(K, 128))
    Mp, Np, Kp = _round_up(M, tm), _round_up(N, tn), _round_up(K, tk)

    # ---- wrapper-side layout glue (no transpose of the big frozen weight) ----
    x2 = x.reshape(M, K)
    if x2.dtype != compute_dtype:
        x2 = x2.astype(compute_dtype)
    w2 = weight if weight.dtype == compute_dtype else weight.astype(compute_dtype)
    rt = lora_right if lora_right.dtype == compute_dtype else lora_right.astype(compute_dtype)
    lt = lora_left if lora_left.dtype == compute_dtype else lora_left.astype(compute_dtype)
    b2 = bias.reshape(1, N)

    # LoRA down-projection hoisted out of the kernel (skinny [M, r] matmul);
    # fold the LoRA scale here so the kernel's finalize dot needs no extra mul.
    low = lax.dot_general(x2, rt, (((1,), (1,)), ((), ())),
                          preferred_element_type=jnp.float32) * scale
    low = low.astype(compute_dtype)

    # Zero-padding only when required (benign for the matmuls, sliced away).
    if (Mp, Kp) != (M, K):
        x2 = jnp.pad(x2, ((0, Mp - M), (0, Kp - K)))
    if (Np, Kp) != (N, K):
        w2 = jnp.pad(w2, ((0, Np - N), (0, Kp - K)))
    if Mp != M:
        low = jnp.pad(low, ((0, Mp - M), (0, 0)))
    if Np != N:
        lt = jnp.pad(lt, ((0, Np - N), (0, 0)))
        b2 = jnp.pad(b2, ((0, 0), (0, Np - N)))

    # VMEM budget: double-buffered bf16 tiles + f32 accumulator, ~50% headroom,
    # capped at 48 MiB so it stays under v7x's 64 MiB physical VMEM.
    if vmem_limit_bytes is None:
        csize = jnp.dtype(compute_dtype).itemsize
        est = (2 * (tm * tk + tn * tk + tm * tn + tm * r + tn * r + tn) * csize
               + tm * tn * 4)
        vmem_limit_bytes = min(max(int(est * 1.5) + (4 << 20), 32 << 20), 48 << 20)

    grid = (Mp // tm, Np // tn, Kp // tk)

    out_p = pl.pallas_call(
        _lora_linear_kernel,
        out_shape=jax.ShapeDtypeStruct((Mp, Np), out_dtype),
        grid_spec=pltpu.PrefetchScalarGridSpec(
            num_scalar_prefetch=0,
            grid=grid,
            in_specs=[
                pl.BlockSpec((tm, tk), lambda i, j, k: (i, k)),   # x
                pl.BlockSpec((tn, tk), lambda i, j, k: (j, k)),   # W as [N, K]
                pl.BlockSpec((tm, r), lambda i, j, k: (i, 0)),    # scale * x @ R^T
                pl.BlockSpec((tn, r), lambda i, j, k: (j, 0)),    # lora_left
                pl.BlockSpec((1, tn), lambda i, j, k: (0, j)),    # bias
            ],
            out_specs=pl.BlockSpec((tm, tn), lambda i, j, k: (i, j)),
            scratch_shapes=[
                pltpu.VMEM((tm, tn), jnp.float32),   # base accumulator
            ],
        ),
        compiler_params=pltpu.CompilerParams(
            dimension_semantics=("parallel", "parallel", "arbitrary"),
            vmem_limit_bytes=vmem_limit_bytes),
    )(x2, w2, low, lt, b2)

    if (Mp, Np) != (M, N):
        out_p = out_p[:M, :N]
    output = out_p.reshape(S, B, N)
    output_bias = None  # skip_bias_add=False -> bias already applied in-kernel
    return output, output_bias
    # TODO(synk): multi-rank tensor-parallel copy/gather collectives are identities
    # at world_size=1 and are not implemented as cross-chip RDMA here.


if __name__ == "__main__":
    # Small, module-consistent shapes: seq=8, batch=2, hidden(columns)=32,
    # rows(output partition)=64, lora_dim=4.
    seq, batch, hidden, rows, lora_dim = 8, 2, 32, 64, 4
    lora_scaling = 1.0

    key = jax.random.PRNGKey(0)
    k_x, k_w, k_r, k_l, k_b = jax.random.split(key, 5)

    x = jax.random.normal(k_x, (seq, batch, hidden), dtype=jnp.float32)
    weight = jax.random.normal(k_w, (rows, hidden), dtype=jnp.float32) * 0.05
    # Synthetic deterministic init. Real module: kaiming-uniform(right), zeros(left);
    # nonzero left here so the LoRA residual path is actually exercised.
    lora_right = jax.random.uniform(k_r, (lora_dim, hidden), dtype=jnp.float32,
                                    minval=-0.3, maxval=0.3)
    lora_left = jax.random.normal(k_l, (rows, lora_dim), dtype=jnp.float32) * 0.1
    bias = jax.random.normal(k_b, (rows,), dtype=jnp.float32) * 0.01

    # Pure-JAX reference for correctness.
    scale = lora_scaling / lora_dim
    ref = (jnp.einsum("sbk,nk->sbn", x, weight)
           + bias[None, None, :]
           + scale * jnp.einsum("sbr,nr->sbn",
                                jnp.einsum("sbk,rk->sbr", x, lora_right),
                                lora_left))

    # f32 compute path (tight tolerance).
    out_f32, out_bias = column_parallel_linear_lora(
        x, weight, lora_right, lora_left, bias,
        lora_scaling=lora_scaling, lora_dim=lora_dim,
        compute_dtype=jnp.float32)
    out_f32 = jax.block_until_ready(out_f32)
    assert out_f32.shape == (seq, batch, rows)
    assert out_bias is None
    assert jnp.allclose(out_f32, ref, atol=2e-3, rtol=2e-3), "f32 mismatch vs reference"

    # Default bf16 compute path (f32 accumulation in-kernel; looser tolerance).
    out_bf16, _ = column_parallel_linear_lora(
        x, weight, lora_right, lora_left, bias,
        lora_scaling=lora_scaling, lora_dim=lora_dim)
    out_bf16 = jax.block_until_ready(out_bf16)
    assert out_bf16.shape == (seq, batch, rows)
    assert jnp.allclose(out_bf16, ref, atol=6e-2, rtol=6e-2), "bf16 mismatch vs reference"

    print("KERNEL_OK")
</pallas_src>

<mosaic_0001>
module attributes {stable_mosaic.version = 11 : i64} {
  func.func @_lora_linear_kernel(%arg0: i32, %arg1: i32, %arg2: i32, %arg3: memref<16x128xf32, #tpu.memory_space<vmem>>, %arg4: memref<128x128xf32, #tpu.memory_space<vmem>>, %arg5: memref<16x4xf32, #tpu.memory_space<vmem>>, %arg6: memref<128x4xf32, #tpu.memory_space<vmem>>, %arg7: memref<1x128xf32, #tpu.memory_space<vmem>>, %arg8: memref<16x128xf32, #tpu.memory_space<vmem>>, %arg9: memref<16x128xf32, #tpu.memory_space<vmem>>) attributes {dimension_semantics = [#tpu.dimension_semantics<parallel>, #tpu.dimension_semantics<parallel>, #tpu.dimension_semantics<arbitrary>], iteration_bounds = array<i64: 1, 1, 1>, scalar_prefetch = 0 : i64, scratch_operands = 1 : i64, tpu.core_type = #tpu.core_type<tc>, window_params = [{transform_indices = @transform_0, window_bounds = array<i64: 16, 128>}, {transform_indices = @transform_1, window_bounds = array<i64: 128, 128>}, {transform_indices = @transform_2, window_bounds = array<i64: 16, 4>}, {transform_indices = @transform_3, window_bounds = array<i64: 128, 4>}, {transform_indices = @transform_4, window_bounds = array<i64: 1, 128>}, {transform_indices = @transform_5, window_bounds = array<i64: 16, 128>}]} {
    %c0_i32 = arith.constant 0 : i32
    %0 = arith.cmpi eq, %arg2, %c0_i32 : i32
    %1 = arith.extui %0 : i1 to i32
    %c0_i32_0 = arith.constant 0 : i32
    %2 = arith.cmpi ne, %1, %c0_i32_0 : i32
    scf.if %2 {
      %cst_10 = arith.constant 0.000000e+00 : f32
      %12 = vector.broadcast %cst_10 : f32 to vector<16x128xf32>
      %c0_11 = arith.constant 0 : index
      %c0_12 = arith.constant 0 : index
      %13 = vector.load %arg9[%c0_11, %c0_12] : memref<16x128xf32, #tpu.memory_space<vmem>>, vector<16x128xf32>
      tpu.vector_store %arg9[%c0_11, %c0_12], %12 {strides = array<i32>} : memref<16x128xf32, #tpu.memory_space<vmem>>, vector<16x128xf32>,
    } else {
    }
    %c0 = arith.constant 0 : index
    %c0_1 = arith.constant 0 : index
    %3 = vector.load %arg9[%c0, %c0_1] : memref<16x128xf32, #tpu.memory_space<vmem>>, vector<16x128xf32>
    %c0_2 = arith.constant 0 : index
    %c0_3 = arith.constant 0 : index
    %4 = vector.load %arg3[%c0_2, %c0_3] : memref<16x128xf32, #tpu.memory_space<vmem>>, vector<16x128xf32>
    %c0_4 = arith.constant 0 : index
    %c0_5 = arith.constant 0 : index
    %5 = vector.load %arg4[%c0_4, %c0_5] : memref<128x128xf32, #tpu.memory_space<vmem>>, vector<128x128xf32>
    %cst = arith.constant dense<0.000000e+00> : vector<16x128xf32>
    %6 = tpu.matmul %4, %5, %cst {dimension_numbers = #tpu.dot_dimension_numbers<[1], [1], [0], [0], [0, 0, 1, 0], [], []>} : vector<16x128xf32>, vector<128x128xf32>, vector<16x128xf32> -> vector<16x128xf32>
    %7 = arith.addf %3, %6 : vector<16x128xf32>
    %c0_6 = arith.constant 0 : index
    %c0_7 = arith.constant 0 : index
    %8 = vector.load %arg9[%c0_6, %c0_7] : memref<16x128xf32, #tpu.memory_space<vmem>>, vector<16x128xf32>
    tpu.vector_store %arg9[%c0_6, %c0_7], %7 {strides = array<i32>} : memref<16x128xf32, #tpu.memory_space<vmem>>, vector<16x128xf32>,
    %c0_i32_8 = arith.constant 0 : i32
    %9 = arith.cmpi eq, %arg2, %c0_i32_8 : i32
    %10 = arith.extui %9 : i1 to i32
    %c0_i32_9 = arith.constant 0 : i32
    %11 = arith.cmpi ne, %10, %c0_i32_9 : i32
    scf.if %11 {
      %c0_10 = arith.constant 0 : index
      %c0_11 = arith.constant 0 : index
      %12 = vector.load %arg5[%c0_10, %c0_11] : memref<16x4xf32, #tpu.memory_space<vmem>>, vector<16x4xf32>
      %c0_12 = arith.constant 0 : index
      %c0_13 = arith.constant 0 : index
      %13 = vector.load %arg6[%c0_12, %c0_13] : memref<128x4xf32, #tpu.memory_space<vmem>>, vector<128x4xf32>
      %cst_14 = arith.constant dense<0.000000e+00> : vector<16x128xf32>
      %14 = tpu.matmul %12, %13, %cst_14 {dimension_numbers = #tpu.dot_dimension_numbers<[1], [1], [0], [0], [0, 0, 1, 0], [], []>} : vector<16x4xf32>, vector<128x4xf32>, vector<16x128xf32> -> vector<16x128xf32>
      %c0_15 = arith.constant 0 : index
      %c0_16 = arith.constant 0 : index
      %15 = vector.load %arg9[%c0_15, %c0_16] : memref<16x128xf32, #tpu.memory_space<vmem>>, vector<16x128xf32>
      %c0_17 = arith.constant 0 : index
      %c0_18 = arith.constant 0 : index
      %16 = vector.load %arg7[%c0_17, %c0_18] : memref<1x128xf32, #tpu.memory_space<vmem>>, vector<1x128xf32>
      %17 = vector.broadcast %16 : vector<1x128xf32> to vector<16x128xf32>
      %18 = arith.addf %15, %17 : vector<16x128xf32>
      %19 = arith.addf %18, %14 : vector<16x128xf32>
      %c0_19 = arith.constant 0 : index
      %c0_20 = arith.constant 0 : index
      %20 = vector.load %arg8[%c0_19, %c0_20] : memref<16x128xf32, #tpu.memory_space<vmem>>, vector<16x128xf32>
      tpu.vector_store %arg8[%c0_19, %c0_20], %19 {strides = array<i32>} : memref<16x128xf32, #tpu.memory_space<vmem>>, vector<16x128xf32>,
    } else {
    }
    return
  }
  func.func @transform_0(%arg0: i32, %arg1: i32, %arg2: i32) -> (i32, i32) {
    %c0_i32 = arith.constant 0 : i32
    return %arg0, %arg2 : i32, i32
  }
  func.func @transform_1(%arg0: i32, %arg1: i32, %arg2: i32) -> (i32, i32) {
    %c0_i32 = arith.constant 0 : i32
    return %arg1, %arg2 : i32, i32
  }
  func.func @transform_2(%arg0: i32, %arg1: i32, %arg2: i32) -> (i32, i32) {
    %c0_i32 = arith.constant 0 : i32
    %c0_i32_0 = arith.constant 0 : i32
    return %arg0, %c0_i32 : i32, i32
  }
  func.func @transform_3(%arg0: i32, %arg1: i32, %arg2: i32) -> (i32, i32) {
    %c0_i32 = arith.constant 0 : i32
    %c0_i32_0 = arith.constant 0 : i32
    return %arg1, %c0_i32 : i32, i32
  }
  func.func @transform_4(%arg0: i32, %arg1: i32, %arg2: i32) -> (i32, i32) {
    %c0_i32 = arith.constant 0 : i32
    %c0_i32_0 = arith.constant 0 : i32
    return %c0_i32, %arg1 : i32, i32
  }
  func.func @transform_5(%arg0: i32, %arg1: i32, %arg2: i32) -> (i32, i32) {
    %c0_i32 = arith.constant 0 : i32
    return %arg0, %arg1 : i32, i32
  }
}

</mosaic_0001>

<llo_original>
// kernel: tpu_custom_call.1
$region0: #{tpu_custom_call.1}
  #allocation0 [shape = 'u32[]', space=smem, size = 0x4, offset = 0x4, fixed_abs, tag = 'smem constant byte address 0x4 - core index']
  #allocation1 [shape = 'u32[144,128]{1,0:T(1,128)}', space=vmem, size = 0x12000, scoped, tag = 'internal scratch']
  #allocation2 [shape = 'f32[16,128]{1,0:T(8,128)}', space=vmem, size = 0x2000, scoped, tag = 'scratch operand']
  %s0 = inlined_call_operand.vmem [shape: f32[16,128], index: 0, kind: input, shape index: {}]
  %s1 = inlined_call_operand.vmem [shape: f32[128,128], index: 1, kind: input, shape index: {}]
  %s2 = inlined_call_operand.vmem [shape: f32[16,4], index: 2, kind: input, shape index: {}]
  %s3 = inlined_call_operand.vmem [shape: f32[128,4], index: 3, kind: input, shape index: {}]
  %s4 = inlined_call_operand.vmem [shape: f32[1,128], index: 4, kind: input, shape index: {}]
  %s5 = inlined_call_operand.hbm [shape: f32[16,128], index: 5, kind: output, shape index: {}]
  %s6 = sld [smem:[#allocation0]]
  $region38: #{tpu_custom_call.1} parent=0
    _
  %s8 = ssub.s32 1, %s6
  %s9 = scalar_select 0, %s8, %s6
  $region1: #{tpu_custom_call.1} parent=0
    #allocation3 [shape = 'u8[8192]{0}', space=vmem, size = 0x2000, scoped, tag = 'output window, operand 0, single buffered']
    #allocation4 [shape = 's32[1]{0}', space=sflag, size = 0x4, scoped, tag = 'scoped memory for tpu_custom_call.1']
    %10 = vsyncpa [#allocation4], 0
    // Predicated region
    $region2: #{tpu_custom_call.1} parent=1 // pred_check
      _
    $region3: #{tpu_custom_call.1} parent=1 // pred_check_branch
      %12 = sbr.rel (0) target = $region5
    $region4: #{tpu_custom_call.1} parent=1 // pred_region
      _
    $region5: #{tpu_custom_call.1} parent=1 // pred_fallthru
      _
    // Predicated region
    $region6: #{tpu_custom_call.1} parent=1 // pred_check
      _
    $region7: #{tpu_custom_call.1} parent=1 // pred_check_branch
      %14 = sbr.rel (0) target = $region9
    $region8: #{tpu_custom_call.1} parent=1 // pred_region
      _
    $region9: #{tpu_custom_call.1} parent=1 // pred_fallthru
      _
    // Predicated region
    $region10: #{tpu_custom_call.1} parent=1 // pred_check
      _
    $region11: #{tpu_custom_call.1} parent=1 // pred_check_branch
      %16 = sbr.rel (0) target = $region13
    $region12: #{tpu_custom_call.1} parent=1 // pred_region
      _
    $region13: #{tpu_custom_call.1} parent=1 // pred_fallthru
      _
    // Predicated region
    $region14: #{tpu_custom_call.1} parent=1 // pred_check
      _
    $region15: #{tpu_custom_call.1} parent=1 // pred_check_branch
      %18 = sbr.rel (0) target = $region17
    $region16: #{tpu_custom_call.1} parent=1 // pred_region
      _
    $region17: #{tpu_custom_call.1} parent=1 // pred_fallthru
      _
    // Predicated region
    $region18: #{tpu_custom_call.1} parent=1 // pred_check
      _
    $region19: #{tpu_custom_call.1} parent=1 // pred_check_branch
      %20 = sbr.rel (0) target = $region21
    $region20: #{tpu_custom_call.1} parent=1 // pred_region
      _
    $region21: #{tpu_custom_call.1} parent=1 // pred_fallthru
      _
    %p21 = scmp.eq.s32.totalorder 0, 0
    // Predicated region
    $region22: #{tpu_custom_call.1} parent=1 // pred_check
      %p22 = pneg %p21
    $region23: #{tpu_custom_call.1} parent=1 // pred_check_branch
      %24 = sbr.rel (%p22) target = $region25
    $region24: #{tpu_custom_call.1} parent=1 // pred_region
      %25 = vst [vmem:[#allocation2] sm:$0xff] 0.0
      %26 = vst [vmem:[#allocation2 + $0x8] sm:$0xff] 0.0
    $region25: #{tpu_custom_call.1} parent=1 // pred_fallthru
      _
    %v27 = vld [vmem:[#allocation2] sm:$0xff]
    %v28 = vld [vmem:[#allocation2 + $0x8] sm:$0xff]
    %v29 = vld [vmem:[%s0] sm:$0xff]
    %v30 = vld [vmem:[%s0 + $0x8] sm:$0xff]
    %v31 = vld [vmem:[%s1] sm:$0xff]
    %v32 = vld [vmem:[%s1 + $0x8] sm:$0xff]
    %v33 = vld [vmem:[%s1 + $0x10] sm:$0xff]
    %v34 = vld [vmem:[%s1 + $0x18] sm:$0xff]
    %v35 = vld [vmem:[%s1 + $0x20] sm:$0xff]
    %v36 = vld [vmem:[%s1 + $0x28] sm:$0xff]
    %v37 = vld [vmem:[%s1 + $0x30] sm:$0xff]
    %v38 = vld [vmem:[%s1 + $0x38] sm:$0xff]
    %v39 = vld [vmem:[%s1 + $0x40] sm:$0xff]
    %v40 = vld [vmem:[%s1 + $0x48] sm:$0xff]
    %v41 = vld [vmem:[%s1 + $0x50] sm:$0xff]
    %v42 = vld [vmem:[%s1 + $0x58] sm:$0xff]
    %v43 = vld [vmem:[%s1 + $0x60] sm:$0xff]
    %v44 = vld [vmem:[%s1 + $0x68] sm:$0xff]
    %v45 = vld [vmem:[%s1 + $0x70] sm:$0xff]
    %v46 = vld [vmem:[%s1 + $0x78] sm:$0xff]
    %47 = vmatprep.subr.mxu0 0.0
    %48 = vmatpush1.xpose.msra.mxu0 %v31
    %49 = vmatprep.subr.mxu0 0.0
    %50 = vmatpush1.xpose.msra.mxu0 %v32
    %51 = vmatprep.subr.mxu0 0.0
    %52 = vmatpush1.xpose.msra.mxu0 %v33
    %53 = vmatprep.subr.mxu0 0.0
    %54 = vmatpush1.xpose.msra.mxu0 %v34
    %55 = vmatprep.subr.mxu0 0.0
    %56 = vmatpush1.xpose.msra.mxu0 %v35
    %57 = vmatprep.subr.mxu0 0.0
    %58 = vmatpush1.xpose.msra.mxu0 %v36
    %59 = vmatprep.subr.mxu0 0.0
    %60 = vmatpush1.xpose.msra.mxu0 %v37
    %61 = vmatprep.subr.mxu0 0.0
    %62 = vmatpush1.xpose.msra.mxu0 %v38
    %63 = vmatprep.subr.mxu0 0.0
    %64 = vmatpush1.xpose.msra.mxu0 %v39
    %65 = vmatprep.subr.mxu0 0.0
    %66 = vmatpush1.xpose.msra.mxu0 %v40
    %67 = vmatprep.subr.mxu0 0.0
    %68 = vmatpush1.xpose.msra.mxu0 %v41
    %69 = vmatprep.subr.mxu0 0.0
    %70 = vmatpush1.xpose.msra.mxu0 %v42
    %71 = vmatprep.subr.mxu0 0.0
    %72 = vmatpush1.xpose.msra.mxu0 %v43
    %73 = vmatprep.subr.mxu0 0.0
    %74 = vmatpush1.xpose.msra.mxu0 %v44
    %75 = vmatprep.subr.mxu0 0.0
    %76 = vmatpush1.xpose.msra.mxu0 %v45
    %77 = vmatprep.subr.mxu0 0.0
    %78 = vmatpush1.xpose.msra.mxu0 %v46
    %79 = vmatprep.subr.mxu0 0.0
    %80 = vmatpush1.xpose.msra.mxu0 0.0
    %81 = vmatprep.subr.mxu0 0.0
    %82 = vmatpush1.xpose.msra.mxu0 0.0
    %83 = vmatprep.subr.mxu0 0.0
    %84 = vmatpush1.xpose.msra.mxu0 0.0
    %85 = vmatprep.subr.mxu0 0.0
    %86 = vmatpush1.xpose.msra.mxu0 0.0
    %87 = vmatprep.subr.mxu0 0.0
    %88 = vmatpush1.xpose.msra.mxu0 0.0
    %89 = vmatprep.subr.mxu0 0.0
    %90 = vmatpush1.xpose.msra.mxu0 0.0
    %91 = vmatprep.subr.mxu0 0.0
    %92 = vmatpush1.xpose.msra.mxu0 0.0
    %93 = vmatprep.subr.mxu0 0.0
    %94 = vmatpush1.xpose.msra.mxu0 0.0
    %95 = vmatprep.subr.mxu0 0.0
    %96 = vmatpush1.xpose.msra.mxu0 0.0
    %97 = vmatprep.subr.mxu0 0.0
    %98 = vmatpush1.xpose.msra.mxu0 0.0
    %99 = vmatprep.subr.mxu0 0.0
    %100 = vmatpush1.xpose.msra.mxu0 0.0
    %101 = vmatprep.subr.mxu0 0.0
    %102 = vmatpush1.xpose.msra.mxu0 0.0
    %103 = vmatprep.subr.mxu0 0.0
    %104 = vmatpush1.xpose.msra.mxu0 0.0
    %105 = vmatprep.subr.mxu0 0.0
    %106 = vmatpush1.xpose.msra.mxu0 0.0
    %107 = vmatprep.subr.mxu0 0.0
    %108 = vmatpush1.xpose.msra.mxu0 0.0
    %109 = vmatprep.subr.mxu0 0.0
    %110 = vmatpush1.xpose.msra.mxu0 0.0
    %111 = vmatprep.mubr.f32.mxu0 0.0
    %112 = vmatmul.mubr.f32.gmra.mrb[0].mxu0 %v29
    %v113 = vpop.f32.mrb[0].mxu0
    %v114 = vadd.f32 0.0, %v113
    %v115 = vpop.f32.mrb[0].mxu0
    %116 = vmatprep.mubr.f32.mxu0 0.0
    %117 = vmatmul.mubr.f32.gmra.mrb[0].mxu0 %v30
    %v118 = vpop.f32.mrb[0].mxu0
    %v119 = vadd.f32 0.0, %v118
    %v120 = vpop.f32.mrb[0].mxu0
    %121 = vdwg.mxu0
    %v122 = vadd.f32 %v27, %v114
    %v123 = vadd.f32 %v28, %v119
    %124 = vst [vmem:[#allocation2] sm:$0xff] %v122
    %125 = vst [vmem:[#allocation2 + $0x8] sm:$0xff] %v123
    // Predicated region
    $region26: #{tpu_custom_call.1} parent=1 // pred_check
      %p126 = pneg %p21
    $region27: #{tpu_custom_call.1} parent=1 // pred_check_branch
      %128 = sbr.rel (%p126) target = $region29
    $region28: #{tpu_custom_call.1} parent=1 // pred_region
      %v129 = vld [vmem:[%s2] sm:$0xff]
      %v130 = vld [vmem:[%s2 + $0x8] sm:$0xff]
      %v131 = vld [vmem:[%s3] sm:$0xff]
      %v132 = vld [vmem:[%s3 + $0x8] sm:$0xff]
      %v133 = vld [vmem:[%s3 + $0x10] sm:$0xff]
      %v134 = vld [vmem:[%s3 + $0x18] sm:$0xff]
      %v135 = vld [vmem:[%s3 + $0x20] sm:$0xff]
      %v136 = vld [vmem:[%s3 + $0x28] sm:$0xff]
      %v137 = vld [vmem:[%s3 + $0x30] sm:$0xff]
      %v138 = vld [vmem:[%s3 + $0x38] sm:$0xff]
      %v139 = vld [vmem:[%s3 + $0x40] sm:$0xff]
      %v140 = vld [vmem:[%s3 + $0x48] sm:$0xff]
      %v141 = vld [vmem:[%s3 + $0x50] sm:$0xff]
      %v142 = vld [vmem:[%s3 + $0x58] sm:$0xff]
      %v143 = vld [vmem:[%s3 + $0x60] sm:$0xff]
      %v144 = vld [vmem:[%s3 + $0x68] sm:$0xff]
      %v145 = vld [vmem:[%s3 + $0x70] sm:$0xff]
      %v146 = vld [vmem:[%s3 + $0x78] sm:$0xff]
      %vm147 = vcmask 31744
      %v149 = vsel %vm147, %v129, 0
      %v152 = vsel %vm147, %v130, 0
      %v155 = vsel %vm147, %v131, 0
      %v158 = vsel %vm147, %v132, 0
      %v161 = vsel %vm147, %v133, 0
      %v164 = vsel %vm147, %v134, 0
      %v167 = vsel %vm147, %v135, 0
      %v170 = vsel %vm147, %v136, 0
      %v173 = vsel %vm147, %v137, 0
      %v176 = vsel %vm147, %v138, 0
      %v179 = vsel %vm147, %v139, 0
      %v182 = vsel %vm147, %v140, 0
      %v185 = vsel %vm147, %v141, 0
      %v188 = vsel %vm147, %v142, 0
      %v191 = vsel %vm147, %v143, 0
      %v194 = vsel %vm147, %v144, 0
      %v197 = vsel %vm147, %v145, 0
      %v200 = vsel %vm147, %v146, 0
      %202 = vmatprep.subr.mxu0 0.0
      %203 = vmatpush1.xpose.msra.mxu0 %v155
      %204 = vmatprep.subr.mxu0 0.0
      %205 = vmatpush1.xpose.msra.mxu0 %v158
      %206 = vmatprep.subr.mxu0 0.0
      %207 = vmatpush1.xpose.msra.mxu0 %v161
      %208 = vmatprep.subr.mxu0 0.0
      %209 = vmatpush1.xpose.msra.mxu0 %v164
      %210 = vmatprep.subr.mxu0 0.0
      %211 = vmatpush1.xpose.msra.mxu0 %v167
      %212 = vmatprep.subr.mxu0 0.0
      %213 = vmatpush1.xpose.msra.mxu0 %v170
      %214 = vmatprep.subr.mxu0 0.0
      %215 = vmatpush1.xpose.msra.mxu0 %v173
      %216 = vmatprep.subr.mxu0 0.0
      %217 = vmatpush1.xpose.msra.mxu0 %v176
      %218 = vmatprep.subr.mxu0 0.0
      %219 = vmatpush1.xpose.msra.mxu0 %v179
      %220 = vmatprep.subr.mxu0 0.0
      %221 = vmatpush1.xpose.msra.mxu0 %v182
      %222 = vmatprep.subr.mxu0 0.0
      %223 = vmatpush1.xpose.msra.mxu0 %v185
      %224 = vmatprep.subr.mxu0 0.0
      %225 = vmatpush1.xpose.msra.mxu0 %v188
      %226 = vmatprep.subr.mxu0 0.0
      %227 = vmatpush1.xpose.msra.mxu0 %v191
      %228 = vmatprep.subr.mxu0 0.0
      %229 = vmatpush1.xpose.msra.mxu0 %v194
      %230 = vmatprep.subr.mxu0 0.0
      %231 = vmatpush1.xpose.msra.mxu0 %v197
      %232 = vmatprep.subr.mxu0 0.0
      %233 = vmatpush1.xpose.msra.mxu0 %v200
      %234 = vmatprep.subr.mxu0 0.0
      %235 = vmatpush1.xpose.msra.mxu0 0.0
      %236 = vmatprep.subr.mxu0 0.0
      %237 = vmatpush1.xpose.msra.mxu0 0.0
      %238 = vmatprep.subr.mxu0 0.0
      %239 = vmatpush1.xpose.msra.mxu0 0.0
      %240 = vmatprep.subr.mxu0 0.0
      %241 = vmatpush1.xpose.msra.mxu0 0.0
      %242 = vmatprep.subr.mxu0 0.0
      %243 = vmatpush1.xpose.msra.mxu0 0.0
      %244 = vmatprep.subr.mxu0 0.0
      %245 = vmatpush1.xpose.msra.mxu0 0.0
      %246 = vmatprep.subr.mxu0 0.0
      %247 = vmatpush1.xpose.msra.mxu0 0.0
      %248 = vmatprep.subr.mxu0 0.0
      %249 = vmatpush1.xpose.msra.mxu0 0.0
      %250 = vmatprep.subr.mxu0 0.0
      %251 = vmatpush1.xpose.msra.mxu0 0.0
      %252 = vmatprep.subr.mxu0 0.0
      %253 = vmatpush1.xpose.msra.mxu0 0.0
      %254 = vmatprep.subr.mxu0 0.0
      %255 = vmatpush1.xpose.msra.mxu0 0.0
      %256 = vmatprep.subr.mxu0 0.0
      %257 = vmatpush1.xpose.msra.mxu0 0.0
      %258 = vmatprep.subr.mxu0 0.0
      %259 = vmatpush1.xpose.msra.mxu0 0.0
      %260 = vmatprep.subr.mxu0 0.0
      %261 = vmatpush1.xpose.msra.mxu0 0.0
      %262 = vmatprep.subr.mxu0 0.0
      %263 = vmatpush1.xpose.msra.mxu0 0.0
      %264 = vmatprep.subr.mxu0 0.0
      %265 = vmatpush1.xpose.msra.mxu0 0.0
      %266 = vmatprep.mubr.f32.mxu0 0.0
      %267 = vmatmul.mubr.f32.gmra.mrb[0].mxu0 %v149
      %v268 = vpop.f32.mrb[0].mxu0
      %v269 = vadd.f32 0.0, %v268
      %v270 = vpop.f32.mrb[0].mxu0
      %271 = vmatprep.mubr.f32.mxu0 0.0
      %272 = vmatmul.mubr.f32.gmra.mrb[0].mxu0 %v152
      %v273 = vpop.f32.mrb[0].mxu0
      %v274 = vadd.f32 0.0, %v273
      %v275 = vpop.f32.mrb[0].mxu0
      %276 = vdwg.mxu0
      %v277 = vld [vmem:[#allocation2] sm:$0xff]
      %v278 = vld [vmem:[#allocation2 + $0x8] sm:$0xff]
      %v279 = vld [vmem:[%s4] sm:$0x1]
      %v281 = vlaneseq
      %v282 = vshrl.u32 %v281, 7
      %v283 = vsub.s32 0, %v282
      %v284 = vrot.slane %v279, %v283
      %v286 = vadd.f32 %v277, %v284
      %v287 = vadd.f32 %v278, %v284
      %v288 = vadd.f32 %v286, %v269
      %v289 = vadd.f32 %v287, %v274
      %290 = vst [vmem:[#allocation3] sm:$0xff] %v288
      %291 = vst [vmem:[#allocation3 + $0x8] sm:$0xff] %v289
    $region29: #{tpu_custom_call.1} parent=1 // pred_fallthru
      _
    // Predicated region
    $region30: #{tpu_custom_call.1} parent=1 // pred_check
      _
    $region31: #{tpu_custom_call.1} parent=1 // pred_check_branch
      %293 = sbr.rel (0) target = $region33
    $region32: #{tpu_custom_call.1} parent=1 // pred_region
      %s295 = ssub.s32 256, 256
      %296 = vsyncadd [#allocation4], %s295
      %s297 = sshll.u32 [#allocation3], 4
      %s298 = int_to_ptr.vmem [resolvable:$true] %s297
      %303 = dma.vmem_to_hbm [thread:$0]  %s298, 256, %s5, [#allocation4], 128, 128, 8
    $region33: #{tpu_custom_call.1} parent=1 // pred_fallthru
      _
    // Predicated region
    $region34: #{tpu_custom_call.1} parent=1 // pred_check
      _
    $region35: #{tpu_custom_call.1} parent=1 // pred_check_branch
      %305 = sbr.rel (0) target = $region37
    $region36: #{tpu_custom_call.1} parent=1 // pred_region
      %306 = dma.done [#allocation4], 256
    $region37: #{tpu_custom_call.1} parent=1 // pred_fallthru
      _
    %307 = vsyncpa [#allocation4], 1

</llo_original>
